<compile_context>
chip_gen: v5e
topology: v5e:2x2
jax: 0.10.0
libtpu: 0.0.40
codegen_flags: <defaults>
</compile_context>

<pallas_src>
import functools

import jax
import jax.numpy as jnp
from jax.experimental import pallas as pl
from jax.experimental.pallas import tpu as pltpu

HIDDEN = 128
LANE = 128            # MXU-friendly column width for the (padded) last weight
DEFAULT_TB = 2048     # max batch-tile rows per grid step (large B amortizes step overhead)


def _round_up(n, m):
    return ((n + m - 1) // m) * m


def _actor_kernel(x_ref, w1_ref, b1_ref, w2_ref, b2_ref, w3_ref, b3_ref,
                  o_ref, *, max_action, action_size):
    # x_ref: (TB, S) f32; w1: (S, 128) bf16; w2: (128, 128) bf16;
    # w3: (128, A_pad) bf16 (zero-padded cols); b1/b2: (1, 128) f32; b3: (1, A) f32;
    # o_ref: (TB, A) f32.
    x = x_ref[...].astype(w1_ref.dtype)          # in-kernel f32 -> bf16 cast

    h1 = jnp.dot(x, w1_ref[...], preferred_element_type=jnp.float32) + b1_ref[...]
    h1 = jnp.maximum(h1, 0.0)

    h2 = jnp.dot(h1.astype(w2_ref.dtype), w2_ref[...],
                 preferred_element_type=jnp.float32) + b2_ref[...]
    h2 = jnp.maximum(h2, 0.0)

    h3 = jnp.dot(h2.astype(w3_ref.dtype), w3_ref[...],
                 preferred_element_type=jnp.float32)
    # Bias / tanh / scale only on the real action columns; padded MXU lanes are dropped.
    h3 = h3[:, :action_size] + b3_ref[...]
    o_ref[...] = (jnp.tanh(h3) * max_action).astype(o_ref.dtype)


def prepare_actor_params(params):
    """One-time parameter preparation (hoisted out of the per-call path).

    Casts weights to bf16 (MXU inputs), biases to f32, and zero-pads W3's output
    columns up to a multiple of 128 so the last matmul stays MXU-lane-dense.
    b3 is kept unpadded at (1, A) so the true action size stays recoverable.
    """
    w3 = params["w3"]
    A = w3.shape[1]
    A_pad = _round_up(max(A, LANE), LANE)
    if A_pad != A:
        w3 = jnp.pad(w3, ((0, 0), (0, A_pad - A)))
    return {
        "w1": params["w1"].astype(jnp.bfloat16),
        "b1": params["b1"].astype(jnp.float32),
        "w2": params["w2"].astype(jnp.bfloat16),
        "b2": params["b2"].astype(jnp.float32),
        "w3": w3.astype(jnp.bfloat16),
        "b3": params["b3"].astype(jnp.float32),
    }


def _choose_tb(B, tb):
    """Pick the batch tile: >=2 grid steps for moderate batches (v7x 2 TCs), capped at tb."""
    if B <= 8:
        return _round_up(B, 8)
    half = _round_up(pl.cdiv(B, 2), 8)
    return min(tb, half)


def actor_forward(x, prepared, max_action, *, tb=DEFAULT_TB):
    """x: (B, state_size) f32. prepared: output of prepare_actor_params.

    Returns (B, action_size) f32 = tanh(relu(relu(x@W1+b1)@W2+b2)@W3+b3) * max_action.
    """
    w1, b1 = prepared["w1"], prepared["b1"]
    w2, b2 = prepared["w2"], prepared["b2"]
    w3, b3 = prepared["w3"], prepared["b3"]

    B, S = x.shape
    A = b3.shape[1]                 # true action size (b3 is unpadded)

    x = x.astype(jnp.float32)

    # Batch tiling: TB multiple of 8; pad B up to a whole number of tiles.
    TB = _choose_tb(B, tb)
    B_pad = _round_up(B, TB)
    if B_pad != B:
        x = jnp.pad(x, ((0, B_pad - B), (0, 0)))
    num_tiles = B_pad // TB

    kernel = functools.partial(_actor_kernel,
                               max_action=float(max_action),
                               action_size=A)

    tiled = lambda shape: pl.BlockSpec(shape, lambda i: (i, 0))      # moves with batch
    resident = lambda shape: pl.BlockSpec(shape, lambda i: (0, 0))   # VMEM-resident params

    out = pl.pallas_call(
        kernel,
        out_shape=jax.ShapeDtypeStruct((B_pad, A), jnp.float32),
        grid=(num_tiles,),
        in_specs=[
            tiled((TB, S)),
            resident(w1.shape), resident(b1.shape),
            resident(w2.shape), resident(b2.shape),
            resident(w3.shape), resident(b3.shape),
        ],
        out_specs=tiled((TB, A)),
        compiler_params=pltpu.CompilerParams(
            dimension_semantics=("parallel",),
            vmem_limit_bytes=32 * 1024 * 1024,
        ),
    )(x, w1, b1, w2, b2, w3, b3)

    if B_pad != B:
        out = out[:B]               # padded tail rows are garbage; drop them
    return out


def init_actor_params(key, state_size, action_size):
    """Deterministic init mimicking PyTorch nn.Linear default (uniform +/- 1/sqrt(fan_in)).
    Weights are stored pre-transposed: (in_features, out_features)."""
    def linear(key, fan_in, fan_out):
        kw, kb = jax.random.split(key)
        bound = 1.0 / jnp.sqrt(fan_in)
        w = jax.random.uniform(kw, (fan_in, fan_out), jnp.float32, -bound, bound)
        b = jax.random.uniform(kb, (1, fan_out), jnp.float32, -bound, bound)
        return w, b

    k1, k2, k3 = jax.random.split(key, 3)
    w1, b1 = linear(k1, state_size, HIDDEN)
    w2, b2 = linear(k2, HIDDEN, HIDDEN)
    w3, b3 = linear(k3, HIDDEN, action_size)
    return {"w1": w1, "b1": b1, "w2": w2, "b2": b2, "w3": w3, "b3": b3}


def _reference_bf16(x, params, max_action):
    """Pure-JAX reference using the same bf16-input / f32-accumulate math."""
    bf = jnp.bfloat16
    f32 = jnp.float32
    h1 = jnp.maximum(
        jnp.dot(x.astype(bf), params["w1"].astype(bf), preferred_element_type=f32)
        + params["b1"], 0.0)
    h2 = jnp.maximum(
        jnp.dot(h1.astype(bf), params["w2"].astype(bf), preferred_element_type=f32)
        + params["b2"], 0.0)
    h3 = (jnp.dot(h2.astype(bf), params["w3"].astype(bf), preferred_element_type=f32)
          + params["b3"])
    return jnp.tanh(h3) * max_action


if __name__ == "__main__":
    key = jax.random.PRNGKey(0)
    k_params, k_x = jax.random.split(key)

    batch = 8
    state_size = 16
    action_size = 4
    max_action = 2.0

    params = init_actor_params(k_params, state_size, action_size)
    prepared = prepare_actor_params(params)   # one-time cast/pad, reused across calls
    x = jax.random.normal(k_x, (batch, state_size), jnp.float32)

    out = actor_forward(x, prepared, max_action)
    out = jax.block_until_ready(out)
    assert out.shape == (batch, action_size)
    assert out.dtype == jnp.float32

    # Reference with matching bf16-input math (tight tolerance).
    ref_bf = _reference_bf16(x, params, max_action)
    assert jnp.allclose(out, ref_bf, atol=2e-3, rtol=2e-3), "mismatch vs bf16 reference"

    # Full-f32 reference (loose tolerance: bf16 MXU inputs, tanh-bounded output).
    h1 = jnp.maximum(x @ params["w1"] + params["b1"], 0.0)
    h2 = jnp.maximum(h1 @ params["w2"] + params["b2"], 0.0)
    ref_f32 = jnp.tanh(h2 @ params["w3"] + params["b3"]) * max_action
    assert jnp.allclose(out, ref_f32, atol=5e-2, rtol=5e-2), "mismatch vs f32 reference"

    print("KERNEL_OK")
</pallas_src>

<mosaic_0001>
module attributes {stable_mosaic.version = 11 : i64} {
  func.func @_actor_kernel(%arg0: i32, %arg1: memref<8x16xf32, #tpu.memory_space<vmem>>, %arg2: memref<16x128xbf16, #tpu.memory_space<vmem>>, %arg3: memref<1x128xf32, #tpu.memory_space<vmem>>, %arg4: memref<128x128xbf16, #tpu.memory_space<vmem>>, %arg5: memref<1x128xf32, #tpu.memory_space<vmem>>, %arg6: memref<128x128xbf16, #tpu.memory_space<vmem>>, %arg7: memref<1x4xf32, #tpu.memory_space<vmem>>, %arg8: memref<8x4xf32, #tpu.memory_space<vmem>>) attributes {dimension_semantics = [#tpu.dimension_semantics<parallel>], iteration_bounds = array<i64: 1>, scalar_prefetch = 0 : i64, scratch_operands = 0 : i64, tpu.core_type = #tpu.core_type<tc>, window_params = [{transform_indices = @transform_0, window_bounds = array<i64: 8, 16>}, {pipeline_mode = #tpu.pipeline_mode<synchronous>, transform_indices = @transform_1, window_bounds = array<i64: 16, 128>}, {pipeline_mode = #tpu.pipeline_mode<synchronous>, transform_indices = @transform_2, window_bounds = array<i64: 1, 128>}, {pipeline_mode = #tpu.pipeline_mode<synchronous>, transform_indices = @transform_3, window_bounds = array<i64: 128, 128>}, {pipeline_mode = #tpu.pipeline_mode<synchronous>, transform_indices = @transform_4, window_bounds = array<i64: 1, 128>}, {pipeline_mode = #tpu.pipeline_mode<synchronous>, transform_indices = @transform_5, window_bounds = array<i64: 128, 128>}, {pipeline_mode = #tpu.pipeline_mode<synchronous>, transform_indices = @transform_6, window_bounds = array<i64: 1, 4>}, {transform_indices = @transform_7, window_bounds = array<i64: 8, 4>}]} {
    %c0 = arith.constant 0 : index
    %c0_0 = arith.constant 0 : index
    %0 = vector.load %arg1[%c0, %c0_0] : memref<8x16xf32, #tpu.memory_space<vmem>>, vector<8x16xf32>
    %1 = arith.truncf %0 : vector<8x16xf32> to vector<8x16xbf16>
    %c0_1 = arith.constant 0 : index
    %c0_2 = arith.constant 0 : index
    %2 = vector.load %arg2[%c0_1, %c0_2] : memref<16x128xbf16, #tpu.memory_space<vmem>>, vector<16x128xbf16>
    %cst = arith.constant dense<0.000000e+00> : vector<8x128xf32>
    %3 = tpu.matmul %1, %2, %cst {dimension_numbers = #tpu.dot_dimension_numbers<[1], [0], [0], [1], [0, 0, 1, 1], [], []>} : vector<8x16xbf16>, vector<16x128xbf16>, vector<8x128xf32> -> vector<8x128xf32>
    %c0_3 = arith.constant 0 : index
    %c0_4 = arith.constant 0 : index
    %4 = vector.load %arg3[%c0_3, %c0_4] : memref<1x128xf32, #tpu.memory_space<vmem>>, vector<1x128xf32>
    %5 = vector.broadcast %4 : vector<1x128xf32> to vector<8x128xf32>
    %6 = arith.addf %3, %5 : vector<8x128xf32>
    %cst_5 = arith.constant 0.000000e+00 : f32
    %7 = vector.broadcast %cst_5 : f32 to vector<8x128xf32>
    %8 = arith.maximumf %6, %7 : vector<8x128xf32>
    %9 = arith.truncf %8 : vector<8x128xf32> to vector<8x128xbf16>
    %c0_6 = arith.constant 0 : index
    %c0_7 = arith.constant 0 : index
    %10 = vector.load %arg4[%c0_6, %c0_7] : memref<128x128xbf16, #tpu.memory_space<vmem>>, vector<128x128xbf16>
    %cst_8 = arith.constant dense<0.000000e+00> : vector<8x128xf32>
    %11 = tpu.matmul %9, %10, %cst_8 {dimension_numbers = #tpu.dot_dimension_numbers<[1], [0], [0], [1], [0, 0, 1, 1], [], []>} : vector<8x128xbf16>, vector<128x128xbf16>, vector<8x128xf32> -> vector<8x128xf32>
    %c0_9 = arith.constant 0 : index
    %c0_10 = arith.constant 0 : index
    %12 = vector.load %arg5[%c0_9, %c0_10] : memref<1x128xf32, #tpu.memory_space<vmem>>, vector<1x128xf32>
    %13 = vector.broadcast %12 : vector<1x128xf32> to vector<8x128xf32>
    %14 = arith.addf %11, %13 : vector<8x128xf32>
    %cst_11 = arith.constant 0.000000e+00 : f32
    %15 = vector.broadcast %cst_11 : f32 to vector<8x128xf32>
    %16 = arith.maximumf %14, %15 : vector<8x128xf32>
    %17 = arith.truncf %16 : vector<8x128xf32> to vector<8x128xbf16>
    %c0_12 = arith.constant 0 : index
    %c0_13 = arith.constant 0 : index
    %18 = vector.load %arg6[%c0_12, %c0_13] : memref<128x128xbf16, #tpu.memory_space<vmem>>, vector<128x128xbf16>
    %cst_14 = arith.constant dense<0.000000e+00> : vector<8x128xf32>
    %19 = tpu.matmul %17, %18, %cst_14 {dimension_numbers = #tpu.dot_dimension_numbers<[1], [0], [0], [1], [0, 0, 1, 1], [], []>} : vector<8x128xbf16>, vector<128x128xbf16>, vector<8x128xf32> -> vector<8x128xf32>
    %20 = vector.extract_strided_slice %19 {offsets = [0, 0], sizes = [8, 4], strides = [1, 1]} : vector<8x128xf32> to vector<8x4xf32>
    %c0_15 = arith.constant 0 : index
    %c0_16 = arith.constant 0 : index
    %21 = vector.load %arg7[%c0_15, %c0_16] : memref<1x4xf32, #tpu.memory_space<vmem>>, vector<1x4xf32>
    %22 = vector.broadcast %21 : vector<1x4xf32> to vector<8x4xf32>
    %23 = arith.addf %20, %22 : vector<8x4xf32>
    %24 = math.tanh %23 : vector<8x4xf32>
    %cst_17 = arith.constant 2.000000e+00 : f32
    %25 = vector.broadcast %cst_17 : f32 to vector<8x4xf32>
    %26 = arith.mulf %24, %25 : vector<8x4xf32>
    %c0_18 = arith.constant 0 : index
    %c0_19 = arith.constant 0 : index
    %27 = vector.load %arg8[%c0_18, %c0_19] : memref<8x4xf32, #tpu.memory_space<vmem>>, vector<8x4xf32>
    tpu.vector_store %arg8[%c0_18, %c0_19], %26 {strides = array<i32>} : memref<8x4xf32, #tpu.memory_space<vmem>>, vector<8x4xf32>,
    return
  }
  func.func @transform_0(%arg0: i32) -> (i32, i32) {
    %c0_i32 = arith.constant 0 : i32
    %c0_i32_0 = arith.constant 0 : i32
    return %arg0, %c0_i32 : i32, i32
  }
  func.func @transform_1(%arg0: i32) -> (i32, i32) {
    %c0_i32 = arith.constant 0 : i32
    %c0_i32_0 = arith.constant 0 : i32
    %c0_i32_1 = arith.constant 0 : i32
    return %c0_i32, %c0_i32_0 : i32, i32
  }
  func.func @transform_2(%arg0: i32) -> (i32, i32) {
    %c0_i32 = arith.constant 0 : i32
    %c0_i32_0 = arith.constant 0 : i32
    %c0_i32_1 = arith.constant 0 : i32
    return %c0_i32, %c0_i32_0 : i32, i32
  }
  func.func @transform_3(%arg0: i32) -> (i32, i32) {
    %c0_i32 = arith.constant 0 : i32
    %c0_i32_0 = arith.constant 0 : i32
    %c0_i32_1 = arith.constant 0 : i32
    return %c0_i32, %c0_i32_0 : i32, i32
  }
  func.func @transform_4(%arg0: i32) -> (i32, i32) {
    %c0_i32 = arith.constant 0 : i32
    %c0_i32_0 = arith.constant 0 : i32
    %c0_i32_1 = arith.constant 0 : i32
    return %c0_i32, %c0_i32_0 : i32, i32
  }
  func.func @transform_5(%arg0: i32) -> (i32, i32) {
    %c0_i32 = arith.constant 0 : i32
    %c0_i32_0 = arith.constant 0 : i32
    %c0_i32_1 = arith.constant 0 : i32
    return %c0_i32, %c0_i32_0 : i32, i32
  }
  func.func @transform_6(%arg0: i32) -> (i32, i32) {
    %c0_i32 = arith.constant 0 : i32
    %c0_i32_0 = arith.constant 0 : i32
    %c0_i32_1 = arith.constant 0 : i32
    return %c0_i32, %c0_i32_0 : i32, i32
  }
  func.func @transform_7(%arg0: i32) -> (i32, i32) {
    %c0_i32 = arith.constant 0 : i32
    %c0_i32_0 = arith.constant 0 : i32
    return %arg0, %c0_i32 : i32, i32
  }
}

</mosaic_0001>

<llo_original>
// kernel: tpu_custom_call.1
$region0: #{tpu_custom_call.1}
  #allocation0 [shape = 'u32[]', space=smem, size = 0x4, offset = 0x4, fixed_abs, tag = 'smem constant byte address 0x4 - core index']
  #allocation1 [shape = 'u32[72,128]{1,0:T(1,128)}', space=vmem, size = 0x9000, scoped, tag = 'internal scratch']
  %s0 = inlined_call_operand.hbm [shape: f32[8,16], index: 0, kind: input, shape index: {}]
  %s1 = inlined_call_operand.hbm [shape: bf16[16,128], index: 1, kind: input, shape index: {}]
  %s2 = inlined_call_operand.vmem [shape: f32[1,128], index: 2, kind: input, shape index: {}]
  %s3 = inlined_call_operand.hbm [shape: bf16[128,128], index: 3, kind: input, shape index: {}]
  %s4 = inlined_call_operand.vmem [shape: f32[1,128], index: 4, kind: input, shape index: {}]
  %s5 = inlined_call_operand.hbm [shape: bf16[128,128], index: 5, kind: input, shape index: {}]
  %s6 = inlined_call_operand.vmem [shape: f32[1,4], index: 6, kind: input, shape index: {}]
  %s7 = inlined_call_operand.vmem [shape: f32[8,4], index: 7, kind: output, shape index: {}]
  %s8 = sld [smem:[#allocation0]]
  $region54: #{tpu_custom_call.1} parent=0
    _
  %s10 = ssub.s32 1, %s8
  %s11 = scalar_select 0, %s10, %s8
  $region1: #{tpu_custom_call.1} parent=0
    #allocation2 [shape = 'u8[4096]{0}', space=vmem, size = 0x1000, scoped, tag = 'input window, operand 0, single buffered']
    #allocation3 [shape = 's32[1]{0}', space=sflag, size = 0x4, scoped, tag = 'scoped memory for tpu_custom_call.1']
    #allocation4 [shape = 'u8[4096]{0}', space=vmem, size = 0x1000, scoped, tag = 'input window, operand 1, single buffered']
    #allocation5 [shape = 's32[1]{0}', space=sflag, size = 0x4, scoped, tag = 'scoped memory for tpu_custom_call.1']
    #allocation6 [shape = 'u8[32768]{0}', space=vmem, size = 0x8000, scoped, tag = 'input window, operand 3, single buffered']
    #allocation7 [shape = 'u8[32768]{0}', space=vmem, size = 0x8000, scoped, tag = 'input window, operand 5, single buffered']
    #allocation8 [shape = 's32[1]{0}', space=sflag, size = 0x4, scoped, tag = 'scoped memory for tpu_custom_call.1']
    %12 = vsyncpa [#allocation3], 0
    %13 = vsyncpa [#allocation5], 0
    %14 = vsyncpa [#allocation8], 0
    // Predicated region
    $region2: #{tpu_custom_call.1} parent=1 // pred_check
      _
    $region3: #{tpu_custom_call.1} parent=1 // pred_check_branch
      %16 = sbr.rel (0) target = $region5
    $region4: #{tpu_custom_call.1} parent=1 // pred_region
      %18 = vsyncadd [#allocation3], 0
      %s20 = sshll.u32 %s0, 4
      %s21 = int_to_ptr.hbm [resolvable:$true] %s20
      %s22 = sshll.u32 [#allocation2], 4
      %s23 = int_to_ptr.vmem [resolvable:$true] %s22
      %25 = dma.hbm_to_vmem [thread:$0]  %s21, 128, %s23, [#allocation3]
    $region5: #{tpu_custom_call.1} parent=1 // pred_fallthru
      _
    // Predicated region
    $region6: #{tpu_custom_call.1} parent=1 // pred_check
      _
    $region7: #{tpu_custom_call.1} parent=1 // pred_check_branch
      %27 = sbr.rel (0) target = $region9
    $region8: #{tpu_custom_call.1} parent=1 // pred_region
      %29 = vsyncadd [#allocation5], 0
      %s30 = sshll.u32 %s1, 4
      %s31 = int_to_ptr.hbm [resolvable:$true] %s30
      %s32 = sshll.u32 [#allocation4], 4
      %s33 = int_to_ptr.vmem [resolvable:$true] %s32
      %38 = dma.hbm_to_vmem [thread:$0]  %s31, 128, %s33, [#allocation5], 64, 64, 4
    $region9: #{tpu_custom_call.1} parent=1 // pred_fallthru
      _
    // Predicated region
    $region10: #{tpu_custom_call.1} parent=1 // pred_check
      _
    $region11: #{tpu_custom_call.1} parent=1 // pred_check_branch
      %40 = sbr.rel (0) target = $region13
    $region12: #{tpu_custom_call.1} parent=1 // pred_region
      _
    $region13: #{tpu_custom_call.1} parent=1 // pred_fallthru
      _
    // Predicated region
    $region14: #{tpu_custom_call.1} parent=1 // pred_check
      _
    $region15: #{tpu_custom_call.1} parent=1 // pred_check_branch
      %42 = sbr.rel (0) target = $region17
    $region16: #{tpu_custom_call.1} parent=1 // pred_region
      %44 = vsyncadd [#allocation5], 0
      %s45 = sshll.u32 %s3, 4
      %s46 = int_to_ptr.hbm [resolvable:$true] %s45
      %s47 = sshll.u32 [#allocation6], 4
      %s48 = int_to_ptr.vmem [resolvable:$true] %s47
      %53 = dma.hbm_to_vmem [thread:$0]  %s46, 1024, %s48, [#allocation5], 64, 64, 4
    $region17: #{tpu_custom_call.1} parent=1 // pred_fallthru
      _
    // Predicated region
    $region18: #{tpu_custom_call.1} parent=1 // pred_check
      _
    $region19: #{tpu_custom_call.1} parent=1 // pred_check_branch
      %55 = sbr.rel (0) target = $region21
    $region20: #{tpu_custom_call.1} parent=1 // pred_region
      _
    $region21: #{tpu_custom_call.1} parent=1 // pred_fallthru
      _
    // Predicated region
    $region22: #{tpu_custom_call.1} parent=1 // pred_check
      _
    $region23: #{tpu_custom_call.1} parent=1 // pred_check_branch
      %57 = sbr.rel (0) target = $region25
    $region24: #{tpu_custom_call.1} parent=1 // pred_region
      %59 = vsyncadd [#allocation8], 0
      %s60 = sshll.u32 %s5, 4
      %s61 = int_to_ptr.hbm [resolvable:$true] %s60
      %s62 = sshll.u32 [#allocation7], 4
      %s63 = int_to_ptr.vmem [resolvable:$true] %s62
      %68 = dma.hbm_to_vmem [thread:$0]  %s61, 1024, %s63, [#allocation8], 64, 64, 4
    $region25: #{tpu_custom_call.1} parent=1 // pred_fallthru
      _
    // Predicated region
    $region26: #{tpu_custom_call.1} parent=1 // pred_check
      _
    $region27: #{tpu_custom_call.1} parent=1 // pred_check_branch
      %70 = sbr.rel (0) target = $region29
    $region28: #{tpu_custom_call.1} parent=1 // pred_region
      _
    $region29: #{tpu_custom_call.1} parent=1 // pred_fallthru
      _
    // Predicated region
    $region30: #{tpu_custom_call.1} parent=1 // pred_check
      _
    $region31: #{tpu_custom_call.1} parent=1 // pred_check_branch
      %72 = sbr.rel (0) target = $region33
    $region32: #{tpu_custom_call.1} parent=1 // pred_region
      %74 = dma.done [#allocation3], 128
    $region33: #{tpu_custom_call.1} parent=1 // pred_fallthru
      _
    // Predicated region
    $region34: #{tpu_custom_call.1} parent=1 // pred_check
      _
    $region35: #{tpu_custom_call.1} parent=1 // pred_check_branch
      %76 = sbr.rel (0) target = $region37
    $region36: #{tpu_custom_call.1} parent=1 // pred_region
      %78 = dma.done [#allocation5], 128
    $region37: #{tpu_custom_call.1} parent=1 // pred_fallthru
      _
    // Predicated region
    $region38: #{tpu_custom_call.1} parent=1 // pred_check
      _
    $region39: #{tpu_custom_call.1} parent=1 // pred_check_branch
      %80 = sbr.rel (0) target = $region41
    $region40: #{tpu_custom_call.1} parent=1 // pred_region
      %82 = dma.done [#allocation5], 1024
    $region41: #{tpu_custom_call.1} parent=1 // pred_fallthru
      _
    // Predicated region
    $region42: #{tpu_custom_call.1} parent=1 // pred_check
      _
    $region43: #{tpu_custom_call.1} parent=1 // pred_check_branch
      %84 = sbr.rel (0) target = $region45
    $region44: #{tpu_custom_call.1} parent=1 // pred_region
      %86 = dma.done [#allocation8], 1024
    $region45: #{tpu_custom_call.1} parent=1 // pred_fallthru
      _
    %v88 = vld [vmem:[#allocation2] sm:$0xff]
    %v89 = vpack.c.bf16 %v88, %v88
    %v90 = vld [vmem:[#allocation4] sm:$0xf]
    %v91 = vld [vmem:[#allocation4 + $0x4] sm:$0xf]
    %v92 = vld [vmem:[%s2] sm:$0x1]
    %v94 = vperm.slane %v92, 0
    %v98 = vunpack.c.l.b16 %v90
    %v99 = vunpack.c.l.b16 %v91
    %v100 = vpack.c.b16 %v99, %v98
    %vm102 = vcmask 130048
    %v104 = vsel %vm102, %v89, 0
    %106 = vmatpush.bf16.msra.mxu0 0
    %107 = vmatpush.bf16.msra.mxu0 0
    %108 = vmatpush.bf16.msra.mxu0 0
    %109 = vmatpush.bf16.msra.mxu0 0
    %110 = vmatpush.bf16.msra.mxu0 0
    %111 = vmatpush.bf16.msra.mxu0 0
    %112 = vmatpush.bf16.msra.mxu0 0
    %113 = vmatpush.bf16.msra.mxu0 %v100
    %114 = vmatmul.bf16.gmra.mxu0 %v104
    %v115 = vpop.f32.mrf.mxu0
    %v116 = vadd.f32 %v94, %v115
    %v117 = vpop.f32.mrf.mxu0
    %118 = vdwg.mxu0
    %v119 = vmax.f32 %v116, 0.0
    %v120 = vpack.c.bf16 %v119, %v119
    %v121 = vld [vmem:[#allocation6] sm:$0xf]
    %v122 = vld [vmem:[#allocation6 + $0x4] sm:$0xf]
    %v123 = vld [vmem:[#allocation6 + $0x8] sm:$0xf]
    %v124 = vld [vmem:[#allocation6 + $0xc] sm:$0xf]
    %v125 = vld [vmem:[#allocation6 + $0x10] sm:$0xf]
    %v126 = vld [vmem:[#allocation6 + $0x14] sm:$0xf]
    %v127 = vld [vmem:[#allocation6 + $0x18] sm:$0xf]
    %v128 = vld [vmem:[#allocation6 + $0x1c] sm:$0xf]
    %v129 = vld [vmem:[#allocation6 + $0x20] sm:$0xf]
    %v130 = vld [vmem:[#allocation6 + $0x24] sm:$0xf]
    %v131 = vld [vmem:[#allocation6 + $0x28] sm:$0xf]
    %v132 = vld [vmem:[#allocation6 + $0x2c] sm:$0xf]
    %v133 = vld [vmem:[#allocation6 + $0x30] sm:$0xf]
    %v134 = vld [vmem:[#allocation6 + $0x34] sm:$0xf]
    %v135 = vld [vmem:[#allocation6 + $0x38] sm:$0xf]
    %v136 = vld [vmem:[#allocation6 + $0x3c] sm:$0xf]
    %v137 = vld [vmem:[%s4] sm:$0x1]
    %v139 = vperm.slane %v137, 0
    %v157 = vunpack.c.l.b16 %v121
    %v158 = vunpack.c.l.b16 %v122
    %v159 = vunpack.c.l.b16 %v123
    %v160 = vunpack.c.l.b16 %v124
    %v161 = vunpack.c.l.b16 %v125
    %v162 = vunpack.c.l.b16 %v126
    %v163 = vunpack.c.l.b16 %v127
    %v164 = vunpack.c.l.b16 %v128
    %v165 = vunpack.c.l.b16 %v129
    %v166 = vunpack.c.l.b16 %v130
    %v167 = vunpack.c.l.b16 %v131
    %v168 = vunpack.c.l.b16 %v132
    %v169 = vunpack.c.l.b16 %v133
    %v170 = vunpack.c.l.b16 %v134
    %v171 = vunpack.c.l.b16 %v135
    %v172 = vunpack.c.l.b16 %v136
    %v173 = vpack.c.b16 %v158, %v157
    %v174 = vpack.c.b16 %v160, %v159
    %v175 = vpack.c.b16 %v162, %v161
    %v176 = vpack.c.b16 %v164, %v163
    %v177 = vpack.c.b16 %v166, %v165
    %v178 = vpack.c.b16 %v168, %v167
    %v179 = vpack.c.b16 %v170, %v169
    %v180 = vpack.c.b16 %v172, %v171
    %189 = vmatpush.bf16.msra.mxu0 %v180
    %190 = vmatpush.bf16.msra.mxu0 %v179
    %191 = vmatpush.bf16.msra.mxu0 %v178
    %192 = vmatpush.bf16.msra.mxu0 %v177
    %193 = vmatpush.bf16.msra.mxu0 %v176
    %194 = vmatpush.bf16.msra.mxu0 %v175
    %195 = vmatpush.bf16.msra.mxu0 %v174
    %196 = vmatpush.bf16.msra.mxu0 %v173
    %197 = vmatmul.bf16.gmra.mxu0 %v120
    %v198 = vpop.f32.mrf.mxu0
    %v199 = vadd.f32 %v139, %v198
    %v200 = vpop.f32.mrf.mxu0
    %201 = vdwg.mxu0
    %v202 = vmax.f32 %v199, 0.0
    %v203 = vpack.c.bf16 %v202, %v202
    %v204 = vld [vmem:[#allocation7] sm:$0xf]
    %v205 = vld [vmem:[#allocation7 + $0x4] sm:$0xf]
    %v206 = vld [vmem:[#allocation7 + $0x8] sm:$0xf]
    %v207 = vld [vmem:[#allocation7 + $0xc] sm:$0xf]
    %v208 = vld [vmem:[#allocation7 + $0x10] sm:$0xf]
    %v209 = vld [vmem:[#allocation7 + $0x14] sm:$0xf]
    %v210 = vld [vmem:[#allocation7 + $0x18] sm:$0xf]
    %v211 = vld [vmem:[#allocation7 + $0x1c] sm:$0xf]
    %v212 = vld [vmem:[#allocation7 + $0x20] sm:$0xf]
    %v213 = vld [vmem:[#allocation7 + $0x24] sm:$0xf]
    %v214 = vld [vmem:[#allocation7 + $0x28] sm:$0xf]
    %v215 = vld [vmem:[#allocation7 + $0x2c] sm:$0xf]
    %v216 = vld [vmem:[#allocation7 + $0x30] sm:$0xf]
    %v217 = vld [vmem:[#allocation7 + $0x34] sm:$0xf]
    %v218 = vld [vmem:[#allocation7 + $0x38] sm:$0xf]
    %v219 = vld [vmem:[#allocation7 + $0x3c] sm:$0xf]
    %v236 = vunpack.c.l.b16 %v204
    %v237 = vunpack.c.l.b16 %v205
    %v238 = vunpack.c.l.b16 %v206
    %v239 = vunpack.c.l.b16 %v207
    %v240 = vunpack.c.l.b16 %v208
    %v241 = vunpack.c.l.b16 %v209
    %v242 = vunpack.c.l.b16 %v210
    %v243 = vunpack.c.l.b16 %v211
    %v244 = vunpack.c.l.b16 %v212
    %v245 = vunpack.c.l.b16 %v213
    %v246 = vunpack.c.l.b16 %v214
    %v247 = vunpack.c.l.b16 %v215
    %v248 = vunpack.c.l.b16 %v216
    %v249 = vunpack.c.l.b16 %v217
    %v250 = vunpack.c.l.b16 %v218
    %v251 = vunpack.c.l.b16 %v219
    %v252 = vpack.c.b16 %v237, %v236
    %v253 = vpack.c.b16 %v239, %v238
    %v254 = vpack.c.b16 %v241, %v240
    %v255 = vpack.c.b16 %v243, %v242
    %v256 = vpack.c.b16 %v245, %v244
    %v257 = vpack.c.b16 %v247, %v246
    %v258 = vpack.c.b16 %v249, %v248
    %v259 = vpack.c.b16 %v251, %v250
    %268 = vmatpush.bf16.msra.mxu0 %v259
    %269 = vmatpush.bf16.msra.mxu0 %v258
    %270 = vmatpush.bf16.msra.mxu0 %v257
    %271 = vmatpush.bf16.msra.mxu0 %v256
    %272 = vmatpush.bf16.msra.mxu0 %v255
    %273 = vmatpush.bf16.msra.mxu0 %v254
    %274 = vmatpush.bf16.msra.mxu0 %v253
    %275 = vmatpush.bf16.msra.mxu0 %v252
    %276 = vmatmul.bf16.gmra.mxu0 %v203
    %v277 = vpop.f32.mrf.mxu0
    %v278 = vadd.f32 0.0, %v277
    %v279 = vpop.f32.mrf.mxu0
    %280 = vdwg.mxu0
    %v281 = vld [vmem:[%s6] sm:$0x1]
    %v283 = vperm.slane %v281, 0
    %v285 = vadd.f32 %v278, %v283
    %v286 = vtanh.pop %v285
    %v287 = vmul.f32 %v286, 2.0
    %vm288 = vcmask 31744
    %289 = vst.msk [vmem:[%s7] sm:$0xff] %vm288, %v287
    // Predicated region
    $region46: #{tpu_custom_call.1} parent=1 // pred_check
      _
    $region47: #{tpu_custom_call.1} parent=1 // pred_check_branch
      %291 = sbr.rel (0) target = $region49
    $region48: #{tpu_custom_call.1} parent=1 // pred_region
      _
    $region49: #{tpu_custom_call.1} parent=1 // pred_fallthru
      _
    // Predicated region
    $region50: #{tpu_custom_call.1} parent=1 // pred_check
      _
    $region51: #{tpu_custom_call.1} parent=1 // pred_check_branch
      %293 = sbr.rel (0) target = $region53
    $region52: #{tpu_custom_call.1} parent=1 // pred_region
      _
    $region53: #{tpu_custom_call.1} parent=1 // pred_fallthru
      _
    %294 = vsyncpa [#allocation3], 1
    %295 = vsyncpa [#allocation5], 1
    %296 = vsyncpa [#allocation8], 1

</llo_original>
